<compile_context>
chip_gen: v5e
topology: v5e:2x2
jax: 0.10.0
libtpu: 0.0.40
codegen_flags: <defaults>
</compile_context>

<pallas_src>
import functools

import jax
import jax.numpy as jnp
from jax.experimental import pallas as pl
from jax.experimental.pallas import tpu as pltpu

LANES = 128
SUBLANES = 8
MAX_TILE_ROWS = 1024  # (1024, 128) f32 block = 512 KiB per input per buffer


def _round_up(n, m):
    return ((n + m - 1) // m) * m


def _charbonnier_kernel(x_ref, y_ref, o_ref, *, eps2, tail_count, tile_rows):
    """One grid step: (8, 128) partial sum of sqrt((x-y)^2 + eps^2) for a block."""
    x = x_ref[...].astype(jnp.float32)
    y = y_ref[...].astype(jnp.float32)
    diff = x - y
    val = jnp.sqrt(diff * diff + jnp.float32(eps2))

    def _partial(v):
        # Fold (tile_rows, 128) -> (8, 128) with pure elementwise vreg adds.
        return jnp.sum(v.reshape(tile_rows // SUBLANES, SUBLANES, LANES), axis=0)

    i = pl.program_id(0)
    is_last = i == pl.num_programs(0) - 1

    # Only the last block can contain padding / out-of-bounds rows: mask there.
    @pl.when(is_last)
    def _():
        row = jax.lax.broadcasted_iota(jnp.int32, val.shape, 0)
        col = jax.lax.broadcasted_iota(jnp.int32, val.shape, 1)
        local = row * LANES + col  # index within this block only (no overflow risk)
        o_ref[0] = _partial(jnp.where(local < tail_count, val, 0.0))

    @pl.when(jnp.logical_not(is_last))
    def _():
        o_ref[0] = _partial(val)


def charbonnier_loss(x, y, eps=1e-3):
    assert x.shape == y.shape
    n_valid = int(x.size)
    assert n_valid > 0

    # Layout-preserving flatten (no copy); do NOT cast here (keeps HBM traffic
    # at the input dtype's width).
    x_flat = jnp.ravel(x)
    y_flat = jnp.ravel(y)

    rem = n_valid % LANES
    if rem:
        # TODO(synk): rare fallback (numel not a multiple of 128) copies the
        # inputs via jnp.pad; common image shapes never hit this path.
        pad = LANES - rem
        x_flat = jnp.pad(x_flat, (0, pad))
        y_flat = jnp.pad(y_flat, (0, pad))

    rows = x_flat.shape[0] // LANES
    tile_rows = min(MAX_TILE_ROWS, _round_up(rows, SUBLANES))
    num_blocks = -(-rows // tile_rows)  # ceil div
    chunk = tile_rows * LANES
    # Real (unpadded, in-bounds) element count inside the last block.
    tail_count = n_valid - (num_blocks - 1) * chunk

    x2d = x_flat.reshape(rows, LANES)
    y2d = y_flat.reshape(rows, LANES)

    kernel = functools.partial(
        _charbonnier_kernel,
        eps2=float(eps) * float(eps),
        tail_count=int(tail_count),
        tile_rows=int(tile_rows),
    )

    partials = pl.pallas_call(
        kernel,
        out_shape=jax.ShapeDtypeStruct((num_blocks, SUBLANES, LANES), jnp.float32),
        grid_spec=pltpu.PrefetchScalarGridSpec(
            num_scalar_prefetch=0,
            grid=(num_blocks,),
            in_specs=[
                pl.BlockSpec((tile_rows, LANES), lambda i: (i, 0)),
                pl.BlockSpec((tile_rows, LANES), lambda i: (i, 0)),
            ],
            out_specs=pl.BlockSpec((1, SUBLANES, LANES), lambda i: (i, 0, 0)),
        ),
        compiler_params=pltpu.CompilerParams(
            dimension_semantics=("parallel",),
        ),
    )(x2d, y2d)

    # Tiny final reduction + normalization in plain JAX.
    return jnp.sum(partials) / jnp.float32(n_valid)


def _reference(x, y, eps):
    diff = x.astype(jnp.float32) - y.astype(jnp.float32)
    return jnp.mean(jnp.sqrt(diff * diff + jnp.float32(eps) * jnp.float32(eps)))


if __name__ == "__main__":
    key = jax.random.PRNGKey(0)
    kx, ky, ka, kb = jax.random.split(key, 4)

    # Primary check: NCHW inputs as the PyTorch module would receive.
    x = jax.random.normal(kx, (2, 4, 16, 16), dtype=jnp.float32)
    y = jax.random.normal(ky, (2, 4, 16, 16), dtype=jnp.float32)
    loss = charbonnier_loss(x, y, eps=1e-3)
    jax.block_until_ready(loss)
    ref = _reference(x, y, 1e-3)
    assert jnp.allclose(loss, ref, rtol=1e-5, atol=1e-6), (loss, ref)

    # Secondary check: uneven row count exercises the masked (partial) last block.
    a = jax.random.normal(ka, (2, 4, 17, 16), dtype=jnp.float32)
    b = jax.random.normal(kb, (2, 4, 17, 16), dtype=jnp.float32)
    loss2 = charbonnier_loss(a, b, eps=1e-3)
    jax.block_until_ready(loss2)
    ref2 = _reference(a, b, 1e-3)
    assert jnp.allclose(loss2, ref2, rtol=1e-5, atol=1e-6), (loss2, ref2)

    print("KERNEL_OK")
</pallas_src>

<mosaic_0001>
module attributes {stable_mosaic.version = 11 : i64} {
  func.func @_charbonnier_kernel(%arg0: i32, %arg1: memref<16x128xf32, #tpu.memory_space<vmem>>, %arg2: memref<16x128xf32, #tpu.memory_space<vmem>>, %arg3: memref<1x8x128xf32, #tpu.memory_space<vmem>>) attributes {dimension_semantics = [#tpu.dimension_semantics<parallel>], iteration_bounds = array<i64: 1>, scalar_prefetch = 0 : i64, scratch_operands = 0 : i64, tpu.core_type = #tpu.core_type<tc>, window_params = [{transform_indices = @transform_0, window_bounds = array<i64: 16, 128>}, {transform_indices = @transform_1, window_bounds = array<i64: 16, 128>}, {transform_indices = @transform_2, window_bounds = array<i64: 1, 8, 128>}]} {
    %c0 = arith.constant 0 : index
    %c0_0 = arith.constant 0 : index
    %0 = vector.load %arg1[%c0, %c0_0] : memref<16x128xf32, #tpu.memory_space<vmem>>, vector<16x128xf32>
    %c0_1 = arith.constant 0 : index
    %c0_2 = arith.constant 0 : index
    %1 = vector.load %arg2[%c0_1, %c0_2] : memref<16x128xf32, #tpu.memory_space<vmem>>, vector<16x128xf32>
    %2 = arith.subf %0, %1 : vector<16x128xf32>
    %3 = arith.mulf %2, %2 : vector<16x128xf32>
    %cst = arith.constant 9.99999997E-7 : f32
    %4 = vector.broadcast %cst : f32 to vector<16x128xf32>
    %5 = arith.addf %3, %4 : vector<16x128xf32>
    %6 = math.sqrt %5 : vector<16x128xf32>
    %c0_i32 = arith.constant 0 : i32
    %7 = arith.cmpi eq, %arg0, %c0_i32 : i32
    %8 = arith.extui %7 : i1 to i32
    %c0_i32_3 = arith.constant 0 : i32
    %9 = arith.cmpi ne, %8, %c0_i32_3 : i32
    scf.if %9 {
      %13 = tpu.iota {dimensions = array<i32: 0>} : vector<16x128xi32>
      %14 = tpu.iota {dimensions = array<i32: 1>} : vector<16x128xi32>
      %c128_i32 = arith.constant 128 : i32
      %15 = vector.broadcast %c128_i32 : i32 to vector<16x128xi32>
      %16 = arith.muli %13, %15 : vector<16x128xi32>
      %17 = arith.addi %16, %14 : vector<16x128xi32>
      %c2048_i32 = arith.constant 2048 : i32
      %18 = vector.broadcast %c2048_i32 : i32 to vector<16x128xi32>
      %19 = arith.cmpi slt, %17, %18 : vector<16x128xi32>
      %cst_5 = arith.constant 0.000000e+00 : f32
      %20 = vector.broadcast %cst_5 : f32 to vector<16x128xf32>
      %21 = arith.select %19, %6, %20 : vector<16x128xi1>, vector<16x128xf32>
      %22 = vector.shape_cast %21 : vector<16x128xf32> to vector<2x8x128xf32>
      %cst_6 = arith.constant dense<0.000000e+00> : vector<8x128xf32>
      %23 = vector.multi_reduction <add>, %22, %cst_6 [0] : vector<2x8x128xf32> to vector<8x128xf32>
      %c0_7 = arith.constant 0 : index
      %c0_8 = arith.constant 0 : index
      %c0_9 = arith.constant 0 : index
      %24 = vector.load %arg3[%c0_7, %c0_8, %c0_9] : memref<1x8x128xf32, #tpu.memory_space<vmem>>, vector<1x8x128xf32>
      %25 = vector.shape_cast %24 : vector<1x8x128xf32> to vector<8x128xf32>
      %26 = vector.shape_cast %23 : vector<8x128xf32> to vector<1x8x128xf32>
      tpu.vector_store %arg3[%c0_7, %c0_8, %c0_9], %26 {strides = array<i32>} : memref<1x8x128xf32, #tpu.memory_space<vmem>>, vector<1x8x128xf32>,
    } else {
    }
    %true = arith.constant true
    %10 = arith.xori %7, %true : i1
    %11 = arith.extui %10 : i1 to i32
    %c0_i32_4 = arith.constant 0 : i32
    %12 = arith.cmpi ne, %11, %c0_i32_4 : i32
    scf.if %12 {
      %13 = vector.shape_cast %6 : vector<16x128xf32> to vector<2x8x128xf32>
      %cst_5 = arith.constant dense<0.000000e+00> : vector<8x128xf32>
      %14 = vector.multi_reduction <add>, %13, %cst_5 [0] : vector<2x8x128xf32> to vector<8x128xf32>
      %c0_6 = arith.constant 0 : index
      %c0_7 = arith.constant 0 : index
      %c0_8 = arith.constant 0 : index
      %15 = vector.load %arg3[%c0_6, %c0_7, %c0_8] : memref<1x8x128xf32, #tpu.memory_space<vmem>>, vector<1x8x128xf32>
      %16 = vector.shape_cast %15 : vector<1x8x128xf32> to vector<8x128xf32>
      %17 = vector.shape_cast %14 : vector<8x128xf32> to vector<1x8x128xf32>
      tpu.vector_store %arg3[%c0_6, %c0_7, %c0_8], %17 {strides = array<i32>} : memref<1x8x128xf32, #tpu.memory_space<vmem>>, vector<1x8x128xf32>,
    } else {
    }
    return
  }
  func.func @transform_0(%arg0: i32) -> (i32, i32) {
    %c0_i32 = arith.constant 0 : i32
    %c0_i32_0 = arith.constant 0 : i32
    return %arg0, %c0_i32 : i32, i32
  }
  func.func @transform_1(%arg0: i32) -> (i32, i32) {
    %c0_i32 = arith.constant 0 : i32
    %c0_i32_0 = arith.constant 0 : i32
    return %arg0, %c0_i32 : i32, i32
  }
  func.func @transform_2(%arg0: i32) -> (i32, i32, i32) {
    %c0_i32 = arith.constant 0 : i32
    %c0_i32_0 = arith.constant 0 : i32
    %c0_i32_1 = arith.constant 0 : i32
    return %arg0, %c0_i32, %c0_i32_0 : i32, i32, i32
  }
}

</mosaic_0001>

<llo_original>
// kernel: tpu_custom_call.1
$region0: #{tpu_custom_call.1}
  #allocation0 [shape = 'u32[]', space=smem, size = 0x4, offset = 0x4, fixed_abs, tag = 'smem constant byte address 0x4 - core index']
  #allocation1 [shape = 'u32[72,128]{1,0:T(1,128)}', space=vmem, size = 0x9000, scoped, tag = 'internal scratch']
  %s0 = inlined_call_operand.hbm [shape: f32[16,128], index: 0, kind: input, shape index: {}]
  %s1 = inlined_call_operand.hbm [shape: f32[16,128], index: 1, kind: input, shape index: {}]
  %s2 = inlined_call_operand.hbm [shape: f32[1,8,128], index: 2, kind: output, shape index: {}]
  %s3 = sld [smem:[#allocation0]]
  $region34: #{tpu_custom_call.1} parent=0
    _
  %s5 = ssub.s32 1, %s3
  %s6 = scalar_select 0, %s5, %s3
  $region1: #{tpu_custom_call.1} parent=0
    #allocation2 [shape = 'u8[8192]{0}', space=vmem, size = 0x2000, scoped, tag = 'input window, operand 0, single buffered']
    #allocation3 [shape = 's32[1]{0}', space=sflag, size = 0x4, scoped, tag = 'scoped memory for tpu_custom_call.1']
    #allocation4 [shape = 's32[1]{0}', space=sflag, size = 0x4, scoped, tag = 'scoped memory for tpu_custom_call.1']
    #allocation5 [shape = 'u8[8192]{0}', space=vmem, size = 0x2000, scoped, tag = 'input window, operand 1, single buffered']
    #allocation6 [shape = 's32[1]{0}', space=sflag, size = 0x4, scoped, tag = 'scoped memory for tpu_custom_call.1']
    #allocation7 [shape = 'u8[4096]{0}', space=vmem, size = 0x1000, scoped, tag = 'output window, operand 0, single buffered']
    %7 = vsyncpa [#allocation3], 0
    %8 = vsyncpa [#allocation6], 0
    %9 = vsyncpa [#allocation4], 0
    // Predicated region
    $region2: #{tpu_custom_call.1} parent=1 // pred_check
      _
    $region3: #{tpu_custom_call.1} parent=1 // pred_check_branch
      %11 = sbr.rel (0) target = $region5
    $region4: #{tpu_custom_call.1} parent=1 // pred_region
      %13 = vsyncadd [#allocation3], 0
      %s14 = sshll.u32 %s0, 4
      %s15 = int_to_ptr.hbm [resolvable:$true] %s14
      %s16 = sshll.u32 [#allocation2], 4
      %s17 = int_to_ptr.vmem [resolvable:$true] %s16
      %22 = dma.hbm_to_vmem [thread:$0]  %s15, 256, %s17, [#allocation3], 128, 128, 8
    $region5: #{tpu_custom_call.1} parent=1 // pred_fallthru
      _
    // Predicated region
    $region6: #{tpu_custom_call.1} parent=1 // pred_check
      _
    $region7: #{tpu_custom_call.1} parent=1 // pred_check_branch
      %24 = sbr.rel (0) target = $region9
    $region8: #{tpu_custom_call.1} parent=1 // pred_region
      %26 = vsyncadd [#allocation6], 0
      %s27 = sshll.u32 %s1, 4
      %s28 = int_to_ptr.hbm [resolvable:$true] %s27
      %s29 = sshll.u32 [#allocation5], 4
      %s30 = int_to_ptr.vmem [resolvable:$true] %s29
      %35 = dma.hbm_to_vmem [thread:$0]  %s28, 256, %s30, [#allocation6], 128, 128, 8
    $region9: #{tpu_custom_call.1} parent=1 // pred_fallthru
      _
    // Predicated region
    $region10: #{tpu_custom_call.1} parent=1 // pred_check
      _
    $region11: #{tpu_custom_call.1} parent=1 // pred_check_branch
      %37 = sbr.rel (0) target = $region13
    $region12: #{tpu_custom_call.1} parent=1 // pred_region
      %39 = dma.done [#allocation3], 256
    $region13: #{tpu_custom_call.1} parent=1 // pred_fallthru
      _
    // Predicated region
    $region14: #{tpu_custom_call.1} parent=1 // pred_check
      _
    $region15: #{tpu_custom_call.1} parent=1 // pred_check_branch
      %41 = sbr.rel (0) target = $region17
    $region16: #{tpu_custom_call.1} parent=1 // pred_region
      %43 = dma.done [#allocation6], 256
    $region17: #{tpu_custom_call.1} parent=1 // pred_fallthru
      _
    %v44 = vld [vmem:[#allocation2] sm:$0xff]
    %v45 = vld [vmem:[#allocation2 + $0x8] sm:$0xff]
    %v46 = vld [vmem:[#allocation5] sm:$0xff]
    %v47 = vld [vmem:[#allocation5 + $0x8] sm:$0xff]
    %v48 = vsub.f32 %v44, %v46
    %v49 = vsub.f32 %v45, %v47
    %v50 = vmul.f32 %v48, %v48
    %v51 = vmul.f32 %v49, %v49
    %v52 = vadd.f32 %v50, 1e-06
    %v53 = vadd.f32 %v51, 1e-06
    %v54 = vrsqrt.pop %v52
    %v55 = vmul.f32 %v54, %v52
    %v56 = vmul.f32 %v55, %v54
    %v57 = vmul.f32 0.5, %v56
    %v58 = vsub.f32 1.5, %v57
    %v59 = vmul.f32 %v54, %v58
    %v60 = vmul.f32 %v52, %v59
    %vm61 = vcmp.eq.f32.partialorder %v52, inf
    %v62 = vsel %vm61, %v52, %v60
    %vm63 = vcmp.eq.f32.partialorder %v52, 0.0
    %v64 = vand.u32 %v52, 2147483648
    %v65 = vsel %vm63, %v64, %v62
    %v66 = vrsqrt.pop %v53
    %v67 = vmul.f32 %v66, %v53
    %v68 = vmul.f32 %v67, %v66
    %v69 = vmul.f32 0.5, %v68
    %v70 = vsub.f32 1.5, %v69
    %v71 = vmul.f32 %v66, %v70
    %v72 = vmul.f32 %v53, %v71
    %vm73 = vcmp.eq.f32.partialorder %v53, inf
    %v74 = vsel %vm73, %v53, %v72
    %vm75 = vcmp.eq.f32.partialorder %v53, 0.0
    %v76 = vand.u32 %v53, 2147483648
    %v77 = vsel %vm75, %v76, %v74
    %p78 = scmp.eq.s32.totalorder 0, 0
    // Predicated region
    $region18: #{tpu_custom_call.1} parent=1 // pred_check
      %p79 = pneg %p78
    $region19: #{tpu_custom_call.1} parent=1 // pred_check_branch
      %81 = sbr.rel (%p79) target = $region21
    $region20: #{tpu_custom_call.1} parent=1 // pred_region
      %v82 = vlaneseq
      %v83 = vshrl.u32 %v82, 7
      %v84 = vadd.s32 %v83, 8
      %v85 = vlaneseq
      %v86 = vand.u32 %v85, 127
      %v87 = vmul.u32 %v83, 128
      %v88 = vmul.u32 %v84, 128
      %v89 = vadd.s32 %v87, %v86
      %v90 = vadd.s32 %v88, %v86
      %vm91 = vcmp.lt.s32.totalorder %v89, 2048
      %vm92 = vcmp.lt.s32.totalorder %v90, 2048
      %v93 = vsel %vm91, %v65, 0.0
      %v94 = vsel %vm92, %v77, 0.0
      %v95 = vadd.f32 %v93, %v94
      %96 = vst [vmem:[#allocation7] sm:$0xff] %v95
    $region21: #{tpu_custom_call.1} parent=1 // pred_fallthru
      _
    %p97 = scmp.ne.s32.totalorder 0, 0
    // Predicated region
    $region22: #{tpu_custom_call.1} parent=1 // pred_check
      %p98 = pneg %p97
    $region23: #{tpu_custom_call.1} parent=1 // pred_check_branch
      %100 = sbr.rel (%p98) target = $region25
    $region24: #{tpu_custom_call.1} parent=1 // pred_region
      %v101 = vadd.f32 %v65, %v77
      %102 = vst [vmem:[#allocation7] sm:$0xff] %v101
    $region25: #{tpu_custom_call.1} parent=1 // pred_fallthru
      _
    // Predicated region
    $region26: #{tpu_custom_call.1} parent=1 // pred_check
      _
    $region27: #{tpu_custom_call.1} parent=1 // pred_check_branch
      %104 = sbr.rel (0) target = $region29
    $region28: #{tpu_custom_call.1} parent=1 // pred_region
      %106 = vsyncadd [#allocation4], 0
      %s108 = sshll.u32 [#allocation7], 4
      %s109 = int_to_ptr.vmem [resolvable:$true] %s108
      %s110 = sshll.u32 %s2, 4
      %s111 = int_to_ptr.hbm [resolvable:$true] %s110
      %113 = dma.vmem_to_hbm [thread:$0]  %s109, 128, %s111, [#allocation4]
    $region29: #{tpu_custom_call.1} parent=1 // pred_fallthru
      _
    // Predicated region
    $region30: #{tpu_custom_call.1} parent=1 // pred_check
      _
    $region31: #{tpu_custom_call.1} parent=1 // pred_check_branch
      %115 = sbr.rel (0) target = $region33
    $region32: #{tpu_custom_call.1} parent=1 // pred_region
      %117 = dma.done [#allocation4], 128
    $region33: #{tpu_custom_call.1} parent=1 // pred_fallthru
      _
    %118 = vsyncpa [#allocation3], 1
    %119 = vsyncpa [#allocation6], 1
    %120 = vsyncpa [#allocation4], 1

</llo_original>
